<compile_context>
chip_gen: v5e
topology: v5e:2x2
jax: 0.10.0
libtpu: 0.0.40
codegen_flags: <defaults>
</compile_context>

<pallas_src>
import math
import functools

import jax
import jax.numpy as jnp
from jax.experimental import pallas as pl
from jax.experimental.pallas import tpu as pltpu


# ---------------------------------------------------------------------------
# helpers
# ---------------------------------------------------------------------------
def _pick_tile(n, target, mult):
    """Largest divisor of n that is <= target and a multiple of `mult`;
    falls back to n (full extent, always legal for BlockSpec)."""
    if n <= target:
        return n
    for t in range(min(target, n), mult - 1, -1):
        if n % t == 0 and t % mult == 0:
            return t
    return n


# ---------------------------------------------------------------------------
# K/V projection pre-pass: kp = k @ Wk.T, vp = v @ Wv.T  (single big MXU dots)
# ---------------------------------------------------------------------------
def _kv_project_kernel(k_ref, v_ref, wk_ref, wv_ref, kp_ref, vp_ref):
    kp_ref[0] = jnp.dot(k_ref[0], wk_ref[...],
                        preferred_element_type=jnp.float32).astype(kp_ref.dtype)
    vp_ref[0] = jnp.dot(v_ref[0], wv_ref[...],
                        preferred_element_type=jnp.float32).astype(vp_ref.dtype)


def _project_kv(k, v, wk_t, wv_t, *, block_rows=512):
    B, Sk, D = k.shape
    tr = _pick_tile(Sk, block_rows, 8)
    return pl.pallas_call(
        _kv_project_kernel,
        out_shape=(jax.ShapeDtypeStruct((B, Sk, D), k.dtype),
                   jax.ShapeDtypeStruct((B, Sk, D), v.dtype)),
        grid_spec=pltpu.PrefetchScalarGridSpec(
            num_scalar_prefetch=0,
            grid=(B, Sk // tr),
            in_specs=[
                pl.BlockSpec((1, tr, D), lambda b, i: (b, i, 0)),
                pl.BlockSpec((1, tr, D), lambda b, i: (b, i, 0)),
                pl.BlockSpec((D, D), lambda b, i: (0, 0)),   # Wk.T, VMEM-resident
                pl.BlockSpec((D, D), lambda b, i: (0, 0)),   # Wv.T, VMEM-resident
            ],
            out_specs=(
                pl.BlockSpec((1, tr, D), lambda b, i: (b, i, 0)),
                pl.BlockSpec((1, tr, D), lambda b, i: (b, i, 0)),
            ),
        ),
        compiler_params=pltpu.CompilerParams(
            dimension_semantics=("parallel", "parallel"),
            vmem_limit_bytes=64 * 1024 * 1024),
    )(k, v, wk_t, wv_t)


# ---------------------------------------------------------------------------
# Flash-style fused attention kernel (Q projection + attention + Wo projection)
# ---------------------------------------------------------------------------
def _mha_flash_kernel(*refs, h, d_k, has_bias, with_attn):
    i = 0
    q_ref, kp_ref, vp_ref = refs[0], refs[1], refs[2]
    i = 3
    bias_ref = refs[i] if has_bias else None
    i += int(has_bias)
    wq_ref, wo_ref = refs[i], refs[i + 1]
    i += 2
    out_ref = refs[i]
    i += 1
    attn_ref = refs[i] if with_attn else None
    i += int(with_attn)
    qproj_sc, m_sc, l_sc, acc_sc = refs[i:i + 4]

    ki = pl.program_id(2)
    nk = pl.num_programs(2)
    cdtype = q_ref.dtype  # native compute dtype fed to the MXU (bf16 stays bf16)

    @pl.when(ki == 0)
    def _init():
        # Project (and pre-scale: 1/sqrt(d_k) folded into Wq on host) the Q tile
        # once per (batch, q-tile); it stays resident across all KV steps.
        qproj_sc[...] = jnp.dot(q_ref[0], wq_ref[...],
                                preferred_element_type=jnp.float32).astype(cdtype)
        m_sc[...] = jnp.full_like(m_sc, -jnp.inf)
        l_sc[...] = jnp.zeros_like(l_sc)
        acc_sc[...] = jnp.zeros_like(acc_sc)

    k_tile = kp_ref[0]                       # (TK, D), pre-projected
    v_tile = vp_ref[0]                       # (TK, D), pre-projected
    bias = bias_ref[0] if has_bias else None  # (TQ, TK) additive f32 bias

    # TODO(synk): d_k-wide contractions under-fill the 256-wide MXU on v6e/v7x;
    # packing multiple heads per MXU call would recover that (accepted per-head loss).
    for head in range(h):                    # static unroll over heads
        sl = slice(head * d_k, (head + 1) * d_k)
        qh = qproj_sc[:, sl]                 # (TQ, d_k)
        kh = k_tile[:, sl]                   # (TK, d_k)
        vh = v_tile[:, sl]                   # (TK, d_k)

        # QK^T without materializing a transpose: contract d_k of both operands.
        s = jax.lax.dot_general(qh, kh, (((1,), (1,)), ((), ())),
                                preferred_element_type=jnp.float32)   # (TQ, TK)
        if has_bias:
            s = s + bias                      # additive mask bias (0 / -1e9)

        # Online softmax (normalization deferred to finalize).
        m_prev = m_sc[head]                                   # (TQ, 1)
        m_new = jnp.maximum(m_prev, jnp.max(s, axis=-1, keepdims=True))
        alpha = jnp.exp(m_prev - m_new)
        p = jnp.exp(s - m_new)
        l_new = alpha * l_sc[head] + jnp.sum(p, axis=-1, keepdims=True)
        m_sc[head] = m_new
        l_sc[head] = l_new
        # Per-head context written in place into the (TQ, D) scratch (no concat).
        acc_sc[:, sl] = alpha * acc_sc[:, sl] + jnp.dot(
            p.astype(cdtype), vh, preferred_element_type=jnp.float32)

        if with_attn:
            # Only emitted when the wrapper forces a single KV tile, so this is
            # the exact softmax (m_new is the true row max, l_new the true sum).
            attn_ref[0, head, :, :] = (p / l_new).astype(attn_ref.dtype)

    @pl.when(ki == nk - 1)
    def _finalize():
        # Deferred softmax normalization (once per q tile) + output projection.
        for head in range(h):
            sl = slice(head * d_k, (head + 1) * d_k)
            acc_sc[:, sl] = acc_sc[:, sl] / l_sc[head]
        out_ref[0] = jnp.dot(acc_sc[...].astype(cdtype), wo_ref[...],
                             preferred_element_type=jnp.float32).astype(out_ref.dtype)


# ---------------------------------------------------------------------------
# Python wrapper (matches MultiHeadAttentionBlock.forward, eval semantics)
# ---------------------------------------------------------------------------
def multi_head_attention_block(q, k, v, mask, w_q, w_k, w_v, w_o, *, h,
                               return_attn=False, attn_dtype=jnp.float32,
                               block_q=256, block_k=512):
    """Pallas equivalent of MultiHeadAttentionBlock.forward.

    q        : (B, Sq, d_model);  k, v : (B, Sk, d_model)
    mask     : None, (Sq,Sk), (1,1,Sq,Sk) or (B,1,Sq,Sk) — zeros are masked out
    w_*      : (d_model, d_model) nn.Linear weights (y = x @ W.T)
    Returns `out` of shape (B, Sq, d_model); if return_attn=True also returns the
    exact softmax probabilities (B, h, Sq, Sk) (what the module stores as
    self.attention_scores).
    """
    q, k, v = jnp.asarray(q), jnp.asarray(k), jnp.asarray(v)
    B, Sq, D = q.shape
    _, Sk, _ = k.shape
    assert D % h == 0, "d_model is not divisible by h"
    d_k = D // h
    scale = 1.0 / math.sqrt(d_k)
    cdtype = q.dtype

    # nn.Linear weights pre-transposed once; the 1/sqrt(d_k) scale folded into Wq.
    wq_t = (jnp.asarray(w_q).T * scale).astype(cdtype)
    wk_t = jnp.asarray(w_k).T.astype(cdtype)
    wv_t = jnp.asarray(w_v).T.astype(cdtype)
    wo_t = jnp.asarray(w_o).T.astype(cdtype)

    # Mask -> single additive bias (0 / -1e9). Never replicated across the batch.
    has_bias = mask is not None
    bias = None
    bias_batched = False
    if has_bias:
        m = jnp.asarray(mask).reshape((-1,) + tuple(jnp.asarray(mask).shape[-2:]))
        if m.shape[0] not in (1, B):
            raise ValueError(
                f"mask batch dim {m.shape[0]} is neither 1 nor batch size {B}")
        bias = jnp.where(m == 0, jnp.float32(-1e9), jnp.float32(0.0))
        bias = jnp.broadcast_to(bias, (m.shape[0], Sq, Sk))
        bias_batched = bias.shape[0] == B
        # TODO(synk): for a purely causal mask this input could be skipped and the
        # bias generated in-kernel from broadcasted_iota.

    # Pre-project K and V once (no per-q-tile recompute, big lane-dense dots).
    kp, vp = _project_kv(k, v, wk_t, wv_t)

    # Tile sizes: q tiles need sublane alignment (x8); kv tiles need lane alignment
    # (x128) whenever the (TQ, TK) bias block is streamed. Exact attention output
    # requires the whole KV extent in one step.
    tq = _pick_tile(Sq, block_q, 8)
    tk = Sk if return_attn else _pick_tile(Sk, block_k, 128 if has_bias else 8)

    inputs = [q, kp, vp]
    in_specs = [
        pl.BlockSpec((1, tq, D), lambda b, qi, ki: (b, qi, 0)),   # q rows
        pl.BlockSpec((1, tk, D), lambda b, qi, ki: (b, ki, 0)),   # projected K
        pl.BlockSpec((1, tk, D), lambda b, qi, ki: (b, ki, 0)),   # projected V
    ]
    if has_bias:
        if bias_batched:
            in_specs.append(pl.BlockSpec((1, tq, tk), lambda b, qi, ki: (b, qi, ki)))
        else:
            in_specs.append(pl.BlockSpec((1, tq, tk), lambda b, qi, ki: (0, qi, ki)))
        inputs.append(bias)
    in_specs += [pl.BlockSpec((D, D), lambda b, qi, ki: (0, 0)),  # Wq.T * scale
                 pl.BlockSpec((D, D), lambda b, qi, ki: (0, 0))]  # Wo.T
    inputs += [wq_t, wo_t]

    out_shapes = [jax.ShapeDtypeStruct((B, Sq, D), q.dtype)]
    out_specs = [pl.BlockSpec((1, tq, D), lambda b, qi, ki: (b, qi, 0))]
    if return_attn:
        out_shapes.append(jax.ShapeDtypeStruct((B, h, Sq, Sk), attn_dtype))
        out_specs.append(pl.BlockSpec((1, h, tq, Sk), lambda b, qi, ki: (b, 0, qi, 0)))

    scratch_shapes = [
        pltpu.VMEM((tq, D), cdtype),          # projected, pre-scaled Q tile
        pltpu.VMEM((h, tq, 1), jnp.float32),  # running max per head
        pltpu.VMEM((h, tq, 1), jnp.float32),  # running denom per head
        pltpu.VMEM((tq, D), jnp.float32),     # per-head contexts, written in place
    ]

    kernel = functools.partial(_mha_flash_kernel, h=h, d_k=d_k,
                               has_bias=has_bias, with_attn=return_attn)

    results = pl.pallas_call(
        kernel,
        out_shape=tuple(out_shapes),
        grid_spec=pltpu.PrefetchScalarGridSpec(
            num_scalar_prefetch=0,
            grid=(B, Sq // tq, Sk // tk),
            in_specs=in_specs,
            out_specs=tuple(out_specs),
            scratch_shapes=scratch_shapes,
        ),
        compiler_params=pltpu.CompilerParams(
            # batch and q-row axes shard across TensorCores; KV axis is the reduction
            dimension_semantics=("parallel", "parallel", "arbitrary"),
            vmem_limit_bytes=64 * 1024 * 1024),
    )(*inputs)

    # TODO(synk): training-mode dropout on attention probs omitted (eval => identity).
    if return_attn:
        return results[0], results[1]
    return results[0]


# ---------------------------------------------------------------------------
# Pure-JAX reference matching the PyTorch module (dropout in eval -> identity)
# ---------------------------------------------------------------------------
def _ref_mha(q, k, v, mask, w_q, w_k, w_v, w_o, h):
    B, Sq, D = q.shape
    d_k = D // h
    query, key_, value = q @ w_q.T, k @ w_k.T, v @ w_v.T

    def split(x):
        return x.reshape(B, -1, h, d_k).transpose(0, 2, 1, 3)

    Q, K, V = split(query), split(key_), split(value)
    scores = (Q @ jnp.swapaxes(K, -1, -2)) / math.sqrt(d_k)
    if mask is not None:
        scores = jnp.where(mask == 0, -1e9, scores)
    p = jax.nn.softmax(scores, axis=-1)
    x = (p @ V).transpose(0, 2, 1, 3).reshape(B, -1, D)
    return x @ w_o.T, p


if __name__ == "__main__":
    key = jax.random.PRNGKey(0)

    # --- test 1: toy shapes, both fast path and attention-probability path ---
    d_model, h, B, S = 32, 4, 2, 8
    ks = jax.random.split(key, 7)
    q = jax.random.normal(ks[0], (B, S, d_model), dtype=jnp.float32)
    k = jax.random.normal(ks[1], (B, S, d_model), dtype=jnp.float32)
    v = jax.random.normal(ks[2], (B, S, d_model), dtype=jnp.float32)
    lim = 1.0 / math.sqrt(d_model)
    w_q = jax.random.uniform(ks[3], (d_model, d_model), jnp.float32, -lim, lim)
    w_k = jax.random.uniform(ks[4], (d_model, d_model), jnp.float32, -lim, lim)
    w_v = jax.random.uniform(ks[5], (d_model, d_model), jnp.float32, -lim, lim)
    w_o = jax.random.uniform(ks[6], (d_model, d_model), jnp.float32, -lim, lim)
    mask = jnp.tril(jnp.ones((S, S), jnp.float32))[None, None]   # causal (1,1,S,S)

    out = multi_head_attention_block(q, k, v, mask, w_q, w_k, w_v, w_o, h=h)
    out = jax.block_until_ready(out)
    out2, attn = multi_head_attention_block(q, k, v, mask, w_q, w_k, w_v, w_o,
                                            h=h, return_attn=True)
    out2, attn = jax.block_until_ready((out2, attn))
    out_nm = jax.block_until_ready(
        multi_head_attention_block(q, k, v, None, w_q, w_k, w_v, w_o, h=h))

    ref_out, ref_p = _ref_mha(q, k, v, mask, w_q, w_k, w_v, w_o, h)
    ref_out_nm, _ = _ref_mha(q, k, v, None, w_q, w_k, w_v, w_o, h)
    assert out.shape == (B, S, d_model)
    assert attn.shape == (B, h, S, S)
    assert jnp.allclose(out, ref_out, atol=2e-4, rtol=2e-4)
    assert jnp.allclose(out2, ref_out, atol=2e-4, rtol=2e-4)
    assert jnp.allclose(attn, ref_p, atol=1e-5, rtol=1e-5)
    assert jnp.allclose(out_nm, ref_out_nm, atol=2e-4, rtol=2e-4)

    # --- test 2: multi-tile flash path (nq=2, nk=2) with causal mask ---
    d_model2, h2, B2, S2 = 128, 4, 2, 256
    ks2 = jax.random.split(jax.random.PRNGKey(1), 7)
    q2 = jax.random.normal(ks2[0], (B2, S2, d_model2), dtype=jnp.float32)
    k2 = jax.random.normal(ks2[1], (B2, S2, d_model2), dtype=jnp.float32)
    v2 = jax.random.normal(ks2[2], (B2, S2, d_model2), dtype=jnp.float32)
    lim2 = 1.0 / math.sqrt(d_model2)
    w_q2 = jax.random.uniform(ks2[3], (d_model2, d_model2), jnp.float32, -lim2, lim2)
    w_k2 = jax.random.uniform(ks2[4], (d_model2, d_model2), jnp.float32, -lim2, lim2)
    w_v2 = jax.random.uniform(ks2[5], (d_model2, d_model2), jnp.float32, -lim2, lim2)
    w_o2 = jax.random.uniform(ks2[6], (d_model2, d_model2), jnp.float32, -lim2, lim2)
    mask2 = jnp.tril(jnp.ones((S2, S2), jnp.float32))[None, None]

    out_big = multi_head_attention_block(q2, k2, v2, mask2, w_q2, w_k2, w_v2, w_o2,
                                         h=h2, block_q=128, block_k=128)
    out_big = jax.block_until_ready(out_big)
    ref_big, _ = _ref_mha(q2, k2, v2, mask2, w_q2, w_k2, w_v2, w_o2, h2)
    assert out_big.shape == (B2, S2, d_model2)
    assert jnp.allclose(out_big, ref_big, atol=2e-4, rtol=2e-4)

    print("KERNEL_OK")
</pallas_src>

<mosaic_0001>
module attributes {stable_mosaic.version = 11 : i64} {
  func.func @_kv_project_kernel(%arg0: i32, %arg1: i32, %arg2: memref<1x8x32xf32, #tpu.memory_space<vmem>>, %arg3: memref<1x8x32xf32, #tpu.memory_space<vmem>>, %arg4: memref<32x32xf32, #tpu.memory_space<vmem>>, %arg5: memref<32x32xf32, #tpu.memory_space<vmem>>, %arg6: memref<1x8x32xf32, #tpu.memory_space<vmem>>, %arg7: memref<1x8x32xf32, #tpu.memory_space<vmem>>) attributes {dimension_semantics = [#tpu.dimension_semantics<parallel>, #tpu.dimension_semantics<parallel>], iteration_bounds = array<i64: 2, 1>, scalar_prefetch = 0 : i64, scratch_operands = 0 : i64, tpu.core_type = #tpu.core_type<tc>, window_params = [{transform_indices = @transform_0, window_bounds = array<i64: 1, 8, 32>}, {transform_indices = @transform_1, window_bounds = array<i64: 1, 8, 32>}, {pipeline_mode = #tpu.pipeline_mode<synchronous>, transform_indices = @transform_2, window_bounds = array<i64: 32, 32>}, {pipeline_mode = #tpu.pipeline_mode<synchronous>, transform_indices = @transform_3, window_bounds = array<i64: 32, 32>}, {transform_indices = @transform_4, window_bounds = array<i64: 1, 8, 32>}, {transform_indices = @transform_5, window_bounds = array<i64: 1, 8, 32>}]} {
    %c0 = arith.constant 0 : index
    %c0_0 = arith.constant 0 : index
    %c0_1 = arith.constant 0 : index
    %0 = vector.load %arg2[%c0, %c0_0, %c0_1] : memref<1x8x32xf32, #tpu.memory_space<vmem>>, vector<1x8x32xf32>
    %1 = vector.shape_cast %0 : vector<1x8x32xf32> to vector<8x32xf32>
    %c0_2 = arith.constant 0 : index
    %c0_3 = arith.constant 0 : index
    %2 = vector.load %arg4[%c0_2, %c0_3] : memref<32x32xf32, #tpu.memory_space<vmem>>, vector<32x32xf32>
    %cst = arith.constant dense<0.000000e+00> : vector<8x32xf32>
    %3 = tpu.matmul %1, %2, %cst {dimension_numbers = #tpu.dot_dimension_numbers<[1], [0], [0], [1], [0, 0, 1, 1], [], []>} : vector<8x32xf32>, vector<32x32xf32>, vector<8x32xf32> -> vector<8x32xf32>
    %c0_4 = arith.constant 0 : index
    %c0_5 = arith.constant 0 : index
    %c0_6 = arith.constant 0 : index
    %4 = vector.load %arg6[%c0_4, %c0_5, %c0_6] : memref<1x8x32xf32, #tpu.memory_space<vmem>>, vector<1x8x32xf32>
    %5 = vector.shape_cast %4 : vector<1x8x32xf32> to vector<8x32xf32>
    %6 = vector.shape_cast %3 : vector<8x32xf32> to vector<1x8x32xf32>
    tpu.vector_store %arg6[%c0_4, %c0_5, %c0_6], %6 {strides = array<i32>} : memref<1x8x32xf32, #tpu.memory_space<vmem>>, vector<1x8x32xf32>,
    %c0_7 = arith.constant 0 : index
    %c0_8 = arith.constant 0 : index
    %c0_9 = arith.constant 0 : index
    %7 = vector.load %arg3[%c0_7, %c0_8, %c0_9] : memref<1x8x32xf32, #tpu.memory_space<vmem>>, vector<1x8x32xf32>
    %8 = vector.shape_cast %7 : vector<1x8x32xf32> to vector<8x32xf32>
    %c0_10 = arith.constant 0 : index
    %c0_11 = arith.constant 0 : index
    %9 = vector.load %arg5[%c0_10, %c0_11] : memref<32x32xf32, #tpu.memory_space<vmem>>, vector<32x32xf32>
    %cst_12 = arith.constant dense<0.000000e+00> : vector<8x32xf32>
    %10 = tpu.matmul %8, %9, %cst_12 {dimension_numbers = #tpu.dot_dimension_numbers<[1], [0], [0], [1], [0, 0, 1, 1], [], []>} : vector<8x32xf32>, vector<32x32xf32>, vector<8x32xf32> -> vector<8x32xf32>
    %c0_13 = arith.constant 0 : index
    %c0_14 = arith.constant 0 : index
    %c0_15 = arith.constant 0 : index
    %11 = vector.load %arg7[%c0_13, %c0_14, %c0_15] : memref<1x8x32xf32, #tpu.memory_space<vmem>>, vector<1x8x32xf32>
    %12 = vector.shape_cast %11 : vector<1x8x32xf32> to vector<8x32xf32>
    %13 = vector.shape_cast %10 : vector<8x32xf32> to vector<1x8x32xf32>
    tpu.vector_store %arg7[%c0_13, %c0_14, %c0_15], %13 {strides = array<i32>} : memref<1x8x32xf32, #tpu.memory_space<vmem>>, vector<1x8x32xf32>,
    return
  }
  func.func @transform_0(%arg0: i32, %arg1: i32) -> (i32, i32, i32) {
    %c0_i32 = arith.constant 0 : i32
    %c0_i32_0 = arith.constant 0 : i32
    return %arg0, %arg1, %c0_i32 : i32, i32, i32
  }
  func.func @transform_1(%arg0: i32, %arg1: i32) -> (i32, i32, i32) {
    %c0_i32 = arith.constant 0 : i32
    %c0_i32_0 = arith.constant 0 : i32
    return %arg0, %arg1, %c0_i32 : i32, i32, i32
  }
  func.func @transform_2(%arg0: i32, %arg1: i32) -> (i32, i32) {
    %c0_i32 = arith.constant 0 : i32
    %c0_i32_0 = arith.constant 0 : i32
    %c0_i32_1 = arith.constant 0 : i32
    return %c0_i32, %c0_i32_0 : i32, i32
  }
  func.func @transform_3(%arg0: i32, %arg1: i32) -> (i32, i32) {
    %c0_i32 = arith.constant 0 : i32
    %c0_i32_0 = arith.constant 0 : i32
    %c0_i32_1 = arith.constant 0 : i32
    return %c0_i32, %c0_i32_0 : i32, i32
  }
  func.func @transform_4(%arg0: i32, %arg1: i32) -> (i32, i32, i32) {
    %c0_i32 = arith.constant 0 : i32
    %c0_i32_0 = arith.constant 0 : i32
    return %arg0, %arg1, %c0_i32 : i32, i32, i32
  }
  func.func @transform_5(%arg0: i32, %arg1: i32) -> (i32, i32, i32) {
    %c0_i32 = arith.constant 0 : i32
    %c0_i32_0 = arith.constant 0 : i32
    return %arg0, %arg1, %c0_i32 : i32, i32, i32
  }
}

</mosaic_0001>

<llo_original>
// kernel: tpu_custom_call.1
$region0: #{tpu_custom_call.1}
  #allocation0 [shape = 'u32[]', space=smem, size = 0x4, offset = 0x4, fixed_abs, tag = 'smem constant byte address 0x4 - core index']
  #allocation1 [shape = 'u32[72,128]{1,0:T(1,128)}', space=vmem, size = 0x9000, scoped, tag = 'internal scratch']
  %s0 = inlined_call_operand.hbm [shape: f32[2,8,32], index: 0, kind: input, shape index: {}]
  %s1 = inlined_call_operand.hbm [shape: f32[2,8,32], index: 1, kind: input, shape index: {}]
  %s2 = inlined_call_operand.hbm [shape: f32[32,32], index: 2, kind: input, shape index: {}]
  %s3 = inlined_call_operand.hbm [shape: f32[32,32], index: 3, kind: input, shape index: {}]
  %s4 = inlined_call_operand.hbm [shape: f32[2,8,32], index: 4, kind: output, shape index: {0}]
  %s5 = inlined_call_operand.hbm [shape: f32[2,8,32], index: 5, kind: output, shape index: {1}]
  %6 = xla_tuple %s4, %s5
  %s7 = sld [smem:[#allocation0]]
  $region73: #{tpu_custom_call.1} parent=0
    _
  %s9 = ssub.s32 1, %s7
  %s10 = scalar_select 0, %s9, %s7
  $region1: #{tpu_custom_call.1} parent=0
    #allocation2 [shape = 'u8[8192]{0}', space=vmem, size = 0x2000, scoped, tag = 'input window, operand 0']
    #allocation3 [shape = 's32[2]{0}', space=sflag, size = 0x8, scoped, tag = 'scoped memory for tpu_custom_call.1']
    #allocation4 [shape = 's32[2]{0}', space=sflag, size = 0x8, scoped, tag = 'scoped memory for tpu_custom_call.1']
    #allocation5 [shape = 'u8[8192]{0}', space=vmem, size = 0x2000, scoped, tag = 'input window, operand 1']
    #allocation6 [shape = 's32[2]{0}', space=sflag, size = 0x8, scoped, tag = 'scoped memory for tpu_custom_call.1']
    #allocation7 [shape = 'u8[16384]{0}', space=vmem, size = 0x4000, scoped, tag = 'input window, operand 2, single buffered']
    #allocation8 [shape = 'u8[16384]{0}', space=vmem, size = 0x4000, scoped, tag = 'input window, operand 3, single buffered']
    #allocation9 [shape = 's32[1]{0}', space=sflag, size = 0x4, scoped, tag = 'scoped memory for tpu_custom_call.1']
    #allocation10 [shape = 'u8[8192]{0}', space=vmem, size = 0x2000, scoped, tag = 'output window, operand 0']
    #allocation11 [shape = 'u8[8192]{0}', space=vmem, size = 0x2000, scoped, tag = 'output window, operand 1']
    #allocation12 [shape = 's32[2]{0}', space=sflag, size = 0x8, scoped, tag = 'scoped memory for tpu_custom_call.1']
    %11 = vsyncpa [#allocation3], 0
    %s12 = scalar_lea.sflag [#allocation3], 1
    %13 = vsyncpa %s12, 0
    %14 = vsyncpa [#allocation6], 0
    %s15 = scalar_lea.sflag [#allocation6], 1
    %16 = vsyncpa %s15, 0
    %17 = vsyncpa [#allocation9], 0
    %18 = vsyncpa [#allocation4], 0
    %s19 = scalar_lea.sflag [#allocation4], 1
    %20 = vsyncpa %s19, 0
    %21 = vsyncpa [#allocation12], 0
    %s22 = scalar_lea.sflag [#allocation12], 1
    %23 = vsyncpa %s22, 0
    loop: start=0, step=1, limit=4
    $region2: #{tpu_custom_call.1} parent=1 // loop_pre_header
      _
    $region3: #{tpu_custom_call.1} parent=1 // loop_header
      %s25 = sphi 0, %s29
      %p26 = scmp.ge.s32.totalorder %s25, 4
      %s32 = sphi 0, %s44
      %s33 = sphi 0, %s40
      %s34 = sphi 0, %s32
      %s35 = sphi 0, %s33
      %s36 = sphi 0, %s34
      %s37 = sphi 0, %s35
      %s49 = sphi 0, %s51
      %s52 = sphi 0, %s49
      %s53 = sphi 0, %s52
      %s69 = sphi 0, %s53
      %s77 = sphi 0, %s79
      %s80 = sphi 0, %s77
      %s81 = sphi 0, %s80
      %s97 = sphi 0, %s81
      %s101 = sphi 0, %s101
      %s103 = sphi 0, %s101
      %s104 = sphi 0, %s103
      %s118 = sphi 0, %s104
      %s122 = sphi 0, %s122
      %s124 = sphi 0, %s122
      %s125 = sphi 0, %s124
      %s139 = sphi 0, %s125
      %s147 = sphi 0, %s149
      %s150 = sphi 0, %s147
      %s151 = sphi 0, %s150
      %s167 = sphi 0, %s151
      %s175 = sphi 0, %s177
      %s178 = sphi 0, %s175
      %s179 = sphi 0, %s178
      %s195 = sphi 0, %s179
    $region4: #{tpu_custom_call.1} parent=1 // loop_header_branch
      %28 = sbr.rel (%p26) target = $region8
    $region5: #{tpu_custom_call.1} parent=1 // loop_body
      %s30 = ssub.s32 %s25, 1
      %s31 = ssub.s32 %s25, 2
      %s38 = sadd.s32 1, %s33
      %p39 = scmp.ge.s32.totalorder %s38, 1
      %s40 = scalar_select %p39, 0, %s38
      %s41 = sadd.s32 1, %s32
      %s42 = scalar_select %p39, %s41, %s32
      %p43 = scmp.ge.s32.totalorder %s42, 2
      %s44 = scalar_select %p43, 0, %s42
      %s45 = ssub.s32 %s32, %s44
      %s46 = ssub.s32 %s33, %s40
      %s47 = sor.u32 %s45, %s46
      %p48 = scmp.eq.s32.totalorder %s47, 0
      %s50 = sadd.s32 %s49, 1
      %s51 = scalar_select %p48, %s49, %s50
      %p54 = pneg %p48
      %p55 = scmp.eq.s32.totalorder %s25, 1
      %p56 = por %p54, %p55
      %p57 = scmp.ne.s32.totalorder %s49, %s52
      %p58 = scmp.eq.s32.totalorder %s25, 0
      %p59 = por %p57, %p58
      %p60 = scmp.ne.s32.totalorder %s49, %s52
      %p61 = scmp.eq.s32.totalorder %s30, 1
      %p62 = por %p60, %p61
      %p63 = scmp.ne.s32.totalorder %s52, %s53
      %p64 = scmp.eq.s32.totalorder %s30, 0
      %p65 = por %p63, %p64
      %p66 = scmp.ne.s32.totalorder %s52, %s53
      %p67 = scmp.eq.s32.totalorder %s31, 1
      %p68 = por %p66, %p67
      %p70 = scmp.ne.s32.totalorder %s53, %s69
      %p71 = scmp.eq.s32.totalorder %s31, 0
      %p72 = por %p70, %p71
      %s73 = ssub.s32 %s32, %s44
      %s74 = ssub.s32 %s33, %s40
      %s75 = sor.u32 %s73, %s74
      %p76 = scmp.eq.s32.totalorder %s75, 0
      %s78 = sadd.s32 %s77, 1
      %s79 = scalar_select %p76, %s77, %s78
      %p82 = pneg %p76
      %p83 = scmp.eq.s32.totalorder %s25, 1
      %p84 = por %p82, %p83
      %p85 = scmp.ne.s32.totalorder %s77, %s80
      %p86 = scmp.eq.s32.totalorder %s25, 0
      %p87 = por %p85, %p86
      %p88 = scmp.ne.s32.totalorder %s77, %s80
      %p89 = scmp.eq.s32.totalorder %s30, 1
      %p90 = por %p88, %p89
      %p91 = scmp.ne.s32.totalorder %s80, %s81
      %p92 = scmp.eq.s32.totalorder %s30, 0
      %p93 = por %p91, %p92
      %p94 = scmp.ne.s32.totalorder %s80, %s81
      %p95 = scmp.eq.s32.totalorder %s31, 1
      %p96 = por %p94, %p95
      %p98 = scmp.ne.s32.totalorder %s81, %s97
      %p99 = scmp.eq.s32.totalorder %s31, 0
      %p100 = por %p98, %p99
      %s102 = sadd.s32 %s101, 1
      %p105 = scmp.eq.s32.totalorder %s25, 1
      %p106 = scmp.ne.s32.totalorder %s101, %s103
      %p107 = scmp.eq.s32.totalorder %s25, 0
      %p108 = por %p106, %p107
      %p109 = scmp.ne.s32.totalorder %s101, %s103
      %p110 = scmp.eq.s32.totalorder %s30, 1
      %p111 = por %p109, %p110
      %p112 = scmp.ne.s32.totalorder %s103, %s104
      %p113 = scmp.eq.s32.totalorder %s30, 0
      %p114 = por %p112, %p113
      %p115 = scmp.ne.s32.totalorder %s103, %s104
      %p116 = scmp.eq.s32.totalorder %s31, 1
      %p117 = por %p115, %p116
      %p119 = scmp.ne.s32.totalorder %s104, %s118
      %p120 = scmp.eq.s32.totalorder %s31, 0
      %p121 = por %p119, %p120
      %s123 = sadd.s32 %s122, 1
      %p126 = scmp.eq.s32.totalorder %s25, 1
      %p127 = scmp.ne.s32.totalorder %s122, %s124
      %p128 = scmp.eq.s32.totalorder %s25, 0
      %p129 = por %p127, %p128
      %p130 = scmp.ne.s32.totalorder %s122, %s124
      %p131 = scmp.eq.s32.totalorder %s30, 1
      %p132 = por %p130, %p131
      %p133 = scmp.ne.s32.totalorder %s124, %s125
      %p134 = scmp.eq.s32.totalorder %s30, 0
      %p135 = por %p133, %p134
      %p136 = scmp.ne.s32.totalorder %s124, %s125
      %p137 = scmp.eq.s32.totalorder %s31, 1
      %p138 = por %p136, %p137
      %p140 = scmp.ne.s32.totalorder %s125, %s139
      %p141 = scmp.eq.s32.totalorder %s31, 0
      %p142 = por %p140, %p141
      %s143 = ssub.s32 %s32, %s44
      %s144 = ssub.s32 %s33, %s40
      %s145 = sor.u32 %s143, %s144
      %p146 = scmp.eq.s32.totalorder %s145, 0
      %s148 = sadd.s32 %s147, 1
      %s149 = scalar_select %p146, %s147, %s148
      %p152 = pneg %p146
      %p153 = scmp.eq.s32.totalorder %s25, 1
      %p154 = por %p152, %p153
      %p155 = scmp.ne.s32.totalorder %s147, %s150
      %p156 = scmp.eq.s32.totalorder %s25, 0
      %p157 = por %p155, %p156
      %p158 = scmp.ne.s32.totalorder %s147, %s150
      %p159 = scmp.eq.s32.totalorder %s30, 1
      %p160 = por %p158, %p159
      %p161 = scmp.ne.s32.totalorder %s150, %s151
      %p162 = scmp.eq.s32.totalorder %s30, 0
      %p163 = por %p161, %p162
      %p164 = scmp.ne.s32.totalorder %s150, %s151
      %p165 = scmp.eq.s32.totalorder %s31, 1
      %p166 = por %p164, %p165
      %p168 = scmp.ne.s32.totalorder %s151, %s167
      %p169 = scmp.eq.s32.totalorder %s31, 0
      %p170 = por %p168, %p169
      %s171 = ssub.s32 %s32, %s44
      %s172 = ssub.s32 %s33, %s40
      %s173 = sor.u32 %s171, %s172
      %p174 = scmp.eq.s32.totalorder %s173, 0
      %s176 = sadd.s32 %s175, 1
      %s177 = scalar_select %p174, %s175, %s176
      %p180 = pneg %p174
      %p181 = scmp.eq.s32.totalorder %s25, 1
      %p182 = por %p180, %p181
      %p183 = scmp.ne.s32.totalorder %s175, %s178
      %p184 = scmp.eq.s32.totalorder %s25, 0
      %p185 = por %p183, %p184
      %p186 = scmp.ne.s32.totalorder %s175, %s178
      %p187 = scmp.eq.s32.totalorder %s30, 1
      %p188 = por %p186, %p187
      %p189 = scmp.ne.s32.totalorder %s178, %s179
      %p190 = scmp.eq.s32.totalorder %s30, 0
      %p191 = por %p189, %p190
      %p192 = scmp.ne.s32.totalorder %s178, %s179
      %p193 = scmp.eq.s32.totalorder %s31, 1
      %p194 = por %p192, %p193
      %p196 = scmp.ne.s32.totalorder %s179, %s195
      %p197 = scmp.eq.s32.totalorder %s31, 0
      %p198 = por %p196, %p197
      %p199 = scmp.le.s32.totalorder 1, %s25
      %p200 = scmp.lt.s32.totalorder %s25, 3
      %p201 = pnand %p199, %p200
      %p202 = pneg %p201
      // Predicated region
      $region9: #{tpu_custom_call.1} parent=5 // pred_check
        _
      $region10: #{tpu_custom_call.1} parent=5 // pred_check_branch
        %204 = sbr.rel (%p201) target = $region12
      $region11: #{tpu_custom_call.1} parent=5 // pred_region
        %s205 = ssub.s32 %s25, 1
        // Predicated region
        $region13: #{tpu_custom_call.1} parent=11 // pred_check
          %p206 = pneg %p114
        $region14: #{tpu_custom_call.1} parent=11 // pred_check_branch
          %208 = sbr.rel (%p206) target = $region16
        $region15: #{tpu_custom_call.1} parent=11 // pred_region
          %210 = vsyncadd [#allocation6], 0
          %s211 = sshll.u32 %s2, 4
          %s212 = int_to_ptr.hbm [resolvable:$true] %s211
          %s213 = sshll.u32 [#allocation7], 4
          %s214 = int_to_ptr.vmem [resolvable:$true] %s213
          %219 = dma.hbm_to_vmem [thread:$0]  %s212, 512, %s214, [#allocation6], 128, 128, 8
        $region16: #{tpu_custom_call.1} parent=11 // pred_fallthru
          _
        // Predicated region
        $region17: #{tpu_custom_call.1} parent=11 // pred_check
          %p220 = pneg %p135
        $region18: #{tpu_custom_call.1} parent=11 // pred_check_branch
          %222 = sbr.rel (%p220) target = $region20
        $region19: #{tpu_custom_call.1} parent=11 // pred_region
          %224 = vsyncadd [#allocation9], 0
          %s225 = sshll.u32 %s3, 4
          %s226 = int_to_ptr.hbm [resolvable:$true] %s225
          %s227 = sshll.u32 [#allocation8], 4
          %s228 = int_to_ptr.vmem [resolvable:$true] %s227
          %233 = dma.hbm_to_vmem [thread:$0]  %s226, 512, %s228, [#allocation9], 128, 128, 8
        $region20: #{tpu_custom_call.1} parent=11 // pred_fallthru
          _
      $region12: #{tpu_custom_call.1} parent=5 // pred_fallthru
        _
      %p234 = scmp.lt.s32.totalorder %s25, 2
      // Predicated region
      $region21: #{tpu_custom_call.1} parent=5 // pred_check
        %p235 = pneg %p234
      $region22: #{tpu_custom_call.1} parent=5 // pred_check_branch
        %237 = sbr.rel (%p235) target = $region24
      $region23: #{tpu_custom_call.1} parent=5 // pred_region
        // Predicated region
        $region25: #{tpu_custom_call.1} parent=23 // pred_check
          %p238 = pneg %p59
        $region26: #{tpu_custom_call.1} parent=23 // pred_check_branch
          %240 = sbr.rel (%p238) target = $region28
        $region27: #{tpu_custom_call.1} parent=23 // pred_region
          %s241 = sand.u32 %s49, 1
          %s242 = scalar_lea.sflag [#allocation3], %s241
          %s243 = sand.u32 %s49, 1
          %s244 = smul.addr %s243, 8
          %s245 = scalar_lea.vmem [#allocation2], %s244
          %247 = vsyncadd %s242, 0
          %s248 = sadd.s32 %s33, %s32
          %s249 = smul.addr %s248, 8
          %s250 = scalar_lea.hbm %s0, %s249
          %s252 = sshll.u32 %s250, 4
          %s253 = int_to_ptr.hbm [resolvable:$true] %s252
          %s254 = sshll.u32 %s245, 4
          %s255 = int_to_ptr.vmem [resolvable:$true] %s254
          %257 = dma.hbm_to_vmem [thread:$0]  %s253, 128, %s255, %s242
        $region28: #{tpu_custom_call.1} parent=23 // pred_fallthru
          _
        // Predicated region
        $region29: #{tpu_custom_call.1} parent=23 // pred_check
          %p258 = pneg %p87
        $region30: #{tpu_custom_call.1} parent=23 // pred_check_branch
          %260 = sbr.rel (%p258) target = $region32
        $region31: #{tpu_custom_call.1} parent=23 // pred_region
          %s261 = sand.u32 %s25, 1
          %s262 = scalar_lea.sflag [#allocation6], %s261
          %s263 = sand.u32 %s77, 1
          %s264 = smul.addr %s263, 8
          %s265 = scalar_lea.vmem [#allocation5], %s264
          %267 = vsyncadd %s262, 0
          %s268 = sadd.s32 %s33, %s32
          %s269 = smul.addr %s268, 8
          %s270 = scalar_lea.hbm %s1, %s269
          %s272 = sshll.u32 %s270, 4
          %s273 = int_to_ptr.hbm [resolvable:$true] %s272
          %s274 = sshll.u32 %s265, 4
          %s275 = int_to_ptr.vmem [resolvable:$true] %s274
          %277 = dma.hbm_to_vmem [thread:$0]  %s273, 128, %s275, %s262
        $region32: #{tpu_custom_call.1} parent=23 // pred_fallthru
          _
      $region24: #{tpu_custom_call.1} parent=5 // pred_fallthru
        _
      %p278 = scmp.le.s32.totalorder 1, %s25
      %p279 = scmp.lt.s32.totalorder %s25, 3
      %p280 = pnand %p278, %p279
      %p281 = pneg %p280
      // Predicated region
      $region33: #{tpu_custom_call.1} parent=5 // pred_check
        _
      $region34: #{tpu_custom_call.1} parent=5 // pred_check_branch
        %283 = sbr.rel (%p280) target = $region36
      $region35: #{tpu_custom_call.1} parent=5 // pred_region
        %s284 = ssub.s32 %s25, 1
        %s285 = sand.u32 %s52, 1
        %s286 = scalar_lea.sflag [#allocation3], %s285
        %s287 = sand.u32 %s52, 1
        %s288 = smul.addr %s287, 8
        %s289 = scalar_lea.vmem [#allocation2], %s288
        // Predicated region
        $region37: #{tpu_custom_call.1} parent=35 // pred_check
          %p290 = pneg %p65
        $region38: #{tpu_custom_call.1} parent=35 // pred_check_branch
          %292 = sbr.rel (%p290) target = $region40
        $region39: #{tpu_custom_call.1} parent=35 // pred_region
          %294 = dma.done %s286, 128
        $region40: #{tpu_custom_call.1} parent=35 // pred_fallthru
          _
        %s295 = sand.u32 %s30, 1
        %s296 = scalar_lea.sflag [#allocation6], %s295
        %s297 = sand.u32 %s80, 1
        %s298 = smul.addr %s297, 8
        %s299 = scalar_lea.vmem [#allocation5], %s298
        // Predicated region
        $region41: #{tpu_custom_call.1} parent=35 // pred_check
          %p300 = pneg %p93
        $region42: #{tpu_custom_call.1} parent=35 // pred_check_branch
          %302 = sbr.rel (%p300) target = $region44
        $region43: #{tpu_custom_call.1} parent=35 // pred_region
          %304 = dma.done %s296, 128
        $region44: #{tpu_custom_call.1} parent=35 // pred_fallthru
          _
        // Predicated region
        $region45: #{tpu_custom_call.1} parent=35 // pred_check
          %p305 = pneg %p114
        $region46: #{tpu_custom_call.1} parent=35 // pred_check_branch
          %307 = sbr.rel (%p305) target = $region48
        $region47: #{tpu_custom_call.1} parent=35 // pred_region
          %309 = dma.done [#allocation6], 512
        $region48: #{tpu_custom_call.1} parent=35 // pred_fallthru
          _
        // Predicated region
        $region49: #{tpu_custom_call.1} parent=35 // pred_check
          %p310 = pneg %p135
        $region50: #{tpu_custom_call.1} parent=35 // pred_check_branch
          %312 = sbr.rel (%p310) target = $region52
        $region51: #{tpu_custom_call.1} parent=35 // pred_region
          %314 = dma.done [#allocation9], 512
        $region52: #{tpu_custom_call.1} parent=35 // pred_fallthru
          _
        %s315 = sand.u32 %s52, 1
        %s316 = scalar_lea.sflag [#allocation3], %s315
        %s317 = sand.u32 %s52, 1
        %s318 = smul.addr %s317, 8
        %s319 = scalar_lea.vmem [#allocation2], %s318
        %p320 = pneg %p65
        %p321 = pneg %p62
        %s322 = sand.u32 %s30, 1
        %s323 = scalar_lea.sflag [#allocation6], %s322
        %s324 = sand.u32 %s80, 1
        %s325 = smul.addr %s324, 8
        %s326 = scalar_lea.vmem [#allocation5], %s325
        %p327 = pneg %p93
        %p328 = pneg %p90
        %p329 = pneg %p114
        %p330 = pneg %p111
        %p331 = pneg %p135
        %p332 = pneg %p132
        %p333 = pneg %p163
        %p334 = pneg %p160
        %s335 = sand.u32 %s150, 1
        %s336 = scalar_lea.sflag [#allocation4], %s335
        %s337 = sand.u32 %s150, 1
        %s338 = smul.addr %s337, 8
        %s339 = scalar_lea.vmem [#allocation10], %s338
        %p340 = pneg %p191
        %p341 = pneg %p188
        %s342 = sand.u32 %s178, 1
        %s343 = scalar_lea.sflag [#allocation12], %s342
        %s344 = sand.u32 %s178, 1
        %s345 = smul.addr %s344, 8
        %s346 = scalar_lea.vmem [#allocation11], %s345
        %v347 = vld [vmem:[%s289] sm:$0xff]
        %v348 = vld [vmem:[#allocation7] sm:$0xff]
        %v349 = vld [vmem:[#allocation7 + $0x8] sm:$0xff]
        %v350 = vld [vmem:[#allocation7 + $0x10] sm:$0xff]
        %v351 = vld [vmem:[#allocation7 + $0x18] sm:$0xff]
        %vm352 = vcmask 261120
        %v354 = vsel %vm352, %v347, 0
        %356 = vmatpush.msra.mxu0 0.0
        %357 = vmatpush.msra.mxu0 0.0
        %358 = vmatpush.msra.mxu0 0.0
        %359 = vmatpush.msra.mxu0 0.0
        %360 = vmatpush.msra.mxu0 0.0
        %361 = vmatpush.msra.mxu0 0.0
        %362 = vmatpush.msra.mxu0 0.0
        %363 = vmatpush.msra.mxu0 0.0
        %364 = vmatpush.msra.mxu0 0.0
        %365 = vmatpush.msra.mxu0 0.0
        %366 = vmatpush.msra.mxu0 0.0
        %367 = vmatpush.msra.mxu0 0.0
        %368 = vmatpush.msra.mxu0 %v351
        %369 = vmatpush.msra.mxu0 %v350
        %370 = vmatpush.msra.mxu0 %v349
        %371 = vmatpush.msra.mxu0 %v348
        %372 = vmatmul.f32.gmra.mxu0 %v354
        %v373 = vpop.f32.mrf.mxu0
        %v374 = vadd.f32 0.0, %v373
        %375 = vdwg.mxu0
        %376 = vst.msk [vmem:[%s339] sm:$0xff] %vm352, %v374
        %v377 = vld [vmem:[%s299] sm:$0xff]
        %v378 = vld [vmem:[#allocation8] sm:$0xff]
        %v379 = vld [vmem:[#allocation8 + $0x8] sm:$0xff]
        %v380 = vld [vmem:[#allocation8 + $0x10] sm:$0xff]
        %v381 = vld [vmem:[#allocation8 + $0x18] sm:$0xff]
        %v383 = vsel %vm352, %v377, 0
        %385 = vmatpush.msra.mxu0 0.0
        %386 = vmatpush.msra.mxu0 0.0
        %387 = vmatpush.msra.mxu0 0.0
        %388 = vmatpush.msra.mxu0 0.0
        %389 = vmatpush.msra.mxu0 0.0
        %390 = vmatpush.msra.mxu0 0.0
        %391 = vmatpush.msra.mxu0 0.0
        %392 = vmatpush.msra.mxu0 0.0
        %393 = vmatpush.msra.mxu0 0.0
        %394 = vmatpush.msra.mxu0 0.0
        %395 = vmatpush.msra.mxu0 0.0
        %396 = vmatpush.msra.mxu0 0.0
        %397 = vmatpush.msra.mxu0 %v381
        %398 = vmatpush.msra.mxu0 %v380
        %399 = vmatpush.msra.mxu0 %v379
        %400 = vmatpush.msra.mxu0 %v378
        %401 = vmatmul.f32.gmra.mxu0 %v383
        %v402 = vpop.f32.mrf.mxu0
        %v403 = vadd.f32 0.0, %v402
        %404 = vdwg.mxu0
        %405 = vst.msk [vmem:[%s346] sm:$0xff] %vm352, %v403
        %s406 = sand.u32 %s150, 1
        %s407 = scalar_lea.sflag [#allocation4], %s406
        %s408 = sand.u32 %s150, 1
        %s409 = smul.addr %s408, 8
        %s410 = scalar_lea.vmem [#allocation10], %s409
        %s411 = sand.u32 %s178, 1
        %s412 = scalar_lea.sflag [#allocation12], %s411
        %s413 = sand.u32 %s178, 1
        %s414 = smul.addr %s413, 8
        %s415 = scalar_lea.vmem [#allocation11], %s414
        // Predicated region
        $region53: #{tpu_custom_call.1} parent=35 // pred_check
          %p416 = pneg %p160
        $region54: #{tpu_custom_call.1} parent=35 // pred_check_branch
          %418 = sbr.rel (%p416) target = $region56
        $region55: #{tpu_custom_call.1} parent=35 // pred_region
          %420 = vsyncadd %s407, 0
          %s421 = sadd.s32 %s35, %s34
          %s422 = smul.addr %s421, 8
          %s423 = scalar_lea.hbm %s4, %s422
          %s425 = sshll.u32 %s410, 4
          %s426 = int_to_ptr.vmem [resolvable:$true] %s425
          %s427 = sshll.u32 %s423, 4
          %s428 = int_to_ptr.hbm [resolvable:$true] %s427
          %430 = dma.vmem_to_hbm [thread:$0]  %s426, 128, %s428, %s407
        $region56: #{tpu_custom_call.1} parent=35 // pred_fallthru
          _
        // Predicated region
        $region57: #{tpu_custom_call.1} parent=35 // pred_check
          %p431 = pneg %p188
        $region58: #{tpu_custom_call.1} parent=35 // pred_check_branch
          %433 = sbr.rel (%p431) target = $region60
        $region59: #{tpu_custom_call.1} parent=35 // pred_region
          %435 = vsyncadd %s412, 0
          %s436 = sadd.s32 %s35, %s34
          %s437 = smul.addr %s436, 8
          %s438 = scalar_lea.hbm %s5, %s437
          %s440 = sshll.u32 %s415, 4
          %s441 = int_to_ptr.vmem [resolvable:$true] %s440
          %s442 = sshll.u32 %s438, 4
          %s443 = int_to_ptr.hbm [resolvable:$true] %s442
          %445 = dma.vmem_to_hbm [thread:$0]  %s441, 128, %s443, %s412
        $region60: #{tpu_custom_call.1} parent=35 // pred_fallthru
          _
      $region36: #{tpu_custom_call.1} parent=5 // pred_fallthru
        _
      %p446 = scmp.le.s32.totalorder 2, %s25
      // Predicated region
      $region61: #{tpu_custom_call.1} parent=5 // pred_check
        %p447 = pneg %p446
      $region62: #{tpu_custom_call.1} parent=5 // pred_check_branch
        %449 = sbr.rel (%p447) target = $region64
      $region63: #{tpu_custom_call.1} parent=5 // pred_region
        %s450 = ssub.s32 %s25, 2
        // Predicated region
        $region65: #{tpu_custom_call.1} parent=63 // pred_check
          %p451 = pneg %p166
        $region66: #{tpu_custom_call.1} parent=63 // pred_check_branch
          %453 = sbr.rel (%p451) target = $region68
        $region67: #{tpu_custom_call.1} parent=63 // pred_region
          %s454 = sand.u32 %s151, 1
          %s455 = scalar_lea.sflag [#allocation4], %s454
          %s456 = sand.u32 %s151, 1
          %s457 = smul.addr %s456, 8
          %s458 = scalar_lea.vmem [#allocation10], %s457
          %460 = dma.done %s455, 128
        $region68: #{tpu_custom_call.1} parent=63 // pred_fallthru
          _
        // Predicated region
        $region69: #{tpu_custom_call.1} parent=63 // pred_check
          %p461 = pneg %p194
        $region70: #{tpu_custom_call.1} parent=63 // pred_check_branch
          %463 = sbr.rel (%p461) target = $region72
        $region71: #{tpu_custom_call.1} parent=63 // pred_region
          %s464 = sand.u32 %s179, 1
          %s465 = scalar_lea.sflag [#allocation12], %s464
          %s466 = sand.u32 %s179, 1
          %s467 = smul.addr %s466, 8
          %s468 = scalar_lea.vmem [#allocation11], %s467
          %470 = dma.done %s465, 128
        $region72: #{tpu_custom_call.1} parent=63 // pred_fallthru
          _
      $region64: #{tpu_custom_call.1} parent=5 // pred_fallthru
        _
    $region6: #{tpu_custom_call.1} parent=1 // loop_footer
      %s29 = sadd.s32 1, %s25
    $region7: #{tpu_custom_call.1} parent=1 // loop_footer_branch
      %24 = sbr.rel target = $region3
    $region8: #{tpu_custom_call.1} parent=1 // loop_exit
      _
    %471 = vsyncpa [#allocation3], 1
    %s472 = scalar_lea.sflag [#allocation3], 1
    %473 = vsyncpa %s472, 1
    %474 = vsyncpa [#allocation6], 1
    %s475 = scalar_lea.sflag [#allocation6], 1
    %476 = vsyncpa %s475, 1
    %477 = vsyncpa [#allocation9], 1
    %478 = vsyncpa [#allocation4], 1
    %s479 = scalar_lea.sflag [#allocation4], 1
    %480 = vsyncpa %s479, 1
    %481 = vsyncpa [#allocation12], 1
    %s482 = scalar_lea.sflag [#allocation12], 1
    %483 = vsyncpa %s482, 1

</llo_original>
